<compile_context>
chip_gen: v7x
topology: tpu7x:2x2x1
jax: 0.10.0
libtpu: 0.0.40
codegen_flags: <defaults>
</compile_context>

<pallas_src>
import functools

import jax
import jax.numpy as jnp
from jax import lax
from jax.experimental import pallas as pl
from jax.experimental.pallas import tpu as pltpu

_LN_EPS = 1e-12                      # module's layer_norm_eps default (not 1e-5)
_INV_SQRT_2 = 0.7071067811865476     # 1/sqrt(2) precomputed (mul instead of div)


def _ffn_kernel(use_seg_ln, eps, approx_gelu, *refs):
    """One (tm, Hp) token tile: LN -> dense_i2h -> GELU -> dense_h2o -> +residual."""
    if use_seg_ln:
        (x_ref, g_ref, b_ref, w1_ref, b1_ref, w2_ref, b2_ref, avg_ref, o_ref) = refs
    else:
        (x_ref, g_ref, b_ref, w1_ref, b1_ref, w2_ref, b2_ref, o_ref) = refs
        avg_ref = None

    x = x_ref[...].astype(jnp.float32)

    # --- LayerNorm (biased variance) + affine; stats stay in f32 -------------
    if use_seg_ln:
        # Packed layout: each 128-lane row holds P tokens.  A block-diagonal
        # averaging matrix gives every H-wide token segment its own mean/var,
        # broadcast across the segment, without any in-kernel reshape/relayout.
        mu = jnp.dot(x, avg_ref[...], preferred_element_type=jnp.float32)
        xc = x - mu
        var = jnp.dot(xc * xc, avg_ref[...], preferred_element_type=jnp.float32)
    else:
        mu = jnp.mean(x, axis=-1, keepdims=True)
        xc = x - mu
        var = jnp.mean(xc * xc, axis=-1, keepdims=True)
    xn = xc * lax.rsqrt(var + eps) * g_ref[...] + b_ref[...]

    # --- dense_i2h on the MXU, f32 accumulation ------------------------------
    h = jnp.dot(xn.astype(w1_ref.dtype), w1_ref[...],
                preferred_element_type=jnp.float32) + b1_ref[...]

    # --- GELU: exact erf matches F.gelu default; tanh variant uses the EUP ---
    if approx_gelu:
        h = jax.nn.gelu(h, approximate=True)
    else:
        h = 0.5 * h * (1.0 + lax.erf(h * _INV_SQRT_2))

    # --- dense_h2o on the MXU -------------------------------------------------
    y = jnp.dot(h.astype(w2_ref.dtype), w2_ref[...],
                preferred_element_type=jnp.float32) + b2_ref[...]

    # dropout(p=0.0) is identity; pre-LN residual add.
    # NOTE: on a partial last tile the out-of-range rows carry garbage through LN,
    # but every op is row-independent and the masked writeback drops them.
    o_ref[...] = (y + x).astype(o_ref.dtype)


def _vmem_capacity_bytes():
    """Per-TensorCore VMEM capacity; conservative fallback if the query fails."""
    try:
        cap = getattr(pltpu.get_tpu_info(), "vmem_capacity_bytes", None)
        if cap:
            return int(cap)
    except Exception:
        pass
    return 64 * 1024 * 1024  # v7x-sized fallback (smallest supported generation)


def _pick_tile_rows(M, Hp, Ip, wbytes, vmem_cap, has_avg,
                    target_block_bytes=4 << 20):
    """Token-tile rows: byte-targeted, multiple of 8, VMEM- and megacore-aware."""
    # ~1-4 MiB x-blocks reach ~85% of the HBM roofline (per-step overhead ~0.35us).
    tm = max(8, min(8192, target_block_bytes // (Hp * 4)))
    tm = (tm // 8) * 8
    if tm >= 256:                       # MXU-friendly: multiples of 256 when possible
        tm = (tm // 256) * 256

    # Guarantee >= 2 grid programs when a legal split exists, so the "parallel"
    # token axis can shard across v7x's two TensorCores.
    if M >= 16:
        half = -(-M // 2)
        tm = min(tm, ((half + 7) // 8) * 8)
    if M <= tm:
        tm = M if M < 8 else (M // 8) * 8

    # VMEM budget.  Constant-index inputs (weights/biases/LN params/avg matrix) are
    # still double-buffered by the pipeline -> count them twice (v7x 64 MiB trap).
    resident = 2 * (2 * Hp * Ip * wbytes + (Ip + 3 * Hp) * 4
                    + (Hp * Hp * 4 if has_avg else 0))

    def tile_bytes(t):
        io = 2 * 2 * t * Hp * 4                      # double-buffered x-in + out blocks
        tmp = t * (3 * Hp + 2 * Ip) * 4              # f32 temporaries (xc, xn, h, y, ...)
        if wbytes != 4:
            tmp += t * (Hp + Ip) * wbytes            # low-precision operand copies
        return io + tmp

    budget = vmem_cap // 2                           # headroom for compiler scratch
    while tm > 8 and resident + tile_bytes(tm) > budget:
        tm = max(8, ((tm // 2) // 8) * 8)
    return max(tm, 1)


def simple_ffn(x, gamma, beta, w1, b1, w2, b2, *,
               eps=_LN_EPS, matmul_dtype=jnp.float32, approximate_gelu=False,
               tm=None, x_buffering=None):
    """x: [B, S, H] f32.  w1:[H,I], w2:[I,H] (pre-transposed [in,out]), biases [1,*].

    matmul_dtype=jnp.bfloat16 enables bf16 MXU operands (f32 accumulation) for
    production perf; default f32 keeps the PyTorch module's numerics.
    """
    B, S, H = x.shape
    I = w1.shape[1]
    N = B * S

    # --- token packing for lane density (H < 128) ----------------------------
    P = 1
    if H < 128 and (128 % H == 0):
        P = 128 // H
        while P > 1 and (N % P) != 0:
            P //= 2
    Hp, Ip, M = P * H, P * I, N // P

    # Row-major reshape: row m of x2d holds tokens m*P .. m*P+P-1 concatenated.
    x2d = x.reshape(M, Hp)

    w1m = w1.astype(jnp.float32)
    w2m = w2.astype(jnp.float32)
    if P > 1:
        eye_p = jnp.eye(P, dtype=jnp.float32)
        w1m = jnp.kron(eye_p, w1m)                       # (P*H, P*I) block-diagonal
        w2m = jnp.kron(eye_p, w2m)                       # (P*I, P*H) block-diagonal
        gammam = jnp.tile(gamma, (1, P))
        betam = jnp.tile(beta, (1, P))
        b1m = jnp.tile(b1, (1, P))
        b2m = jnp.tile(b2, (1, P))
        avgm = jnp.kron(eye_p, jnp.full((H, H), 1.0 / H, jnp.float32))  # per-token mean
    else:
        gammam, betam, b1m, b2m, avgm = gamma, beta, b1, b2, None
    w1m = w1m.astype(matmul_dtype)
    w2m = w2m.astype(matmul_dtype)
    wbytes = jnp.dtype(matmul_dtype).itemsize

    vmem_cap = _vmem_capacity_bytes()
    if tm is None:
        tm = _pick_tile_rows(M, Hp, Ip, wbytes, vmem_cap, has_avg=(P > 1))
    tm = min(tm, M)
    grid_n = pl.cdiv(M, tm)

    cost = pl.CostEstimate(
        flops=int(4 * M * Hp * Ip + (4 * M * Hp * Hp if P > 1 else 0)),
        transcendentals=int(M * Ip),
        bytes_accessed=int(2 * M * Hp * 4 + 2 * Hp * Ip * wbytes
                           + (Ip + 3 * Hp) * 4 + (Hp * Hp * 4 if P > 1 else 0)),
    )

    const = lambda i: (0, 0)
    if x_buffering is None:
        x_spec = pl.BlockSpec((tm, Hp), lambda i: (i, 0))
    else:
        # Optional: deepen input multi-buffering if profiles show exposed per-step DMA.
        x_spec = pl.BlockSpec((tm, Hp), lambda i: (i, 0),
                              pipeline_mode=pl.Buffered(x_buffering))

    in_specs = [
        x_spec,                                   # x: tiled over packed token rows
        pl.BlockSpec((1, Hp), const),             # layer_norm weight (gamma), resident
        pl.BlockSpec((1, Hp), const),             # layer_norm bias   (beta),  resident
        pl.BlockSpec((Hp, Ip), const),            # dense_i2h weight [in,out], resident
        pl.BlockSpec((1, Ip), const),             # dense_i2h bias,            resident
        pl.BlockSpec((Ip, Hp), const),            # dense_h2o weight [in,out], resident
        pl.BlockSpec((1, Hp), const),             # dense_h2o bias,            resident
    ]
    inputs = [x2d, gammam, betam, w1m, b1m, w2m, b2m]
    if P > 1:
        in_specs.append(pl.BlockSpec((Hp, Hp), const))   # block-diag averaging matrix
        inputs.append(avgm)

    kernel = functools.partial(_ffn_kernel, P > 1, float(eps), bool(approximate_gelu))

    out2d = pl.pallas_call(
        kernel,
        out_shape=jax.ShapeDtypeStruct((M, Hp), x.dtype),
        grid=(grid_n,),
        in_specs=in_specs,
        out_specs=pl.BlockSpec((tm, Hp), lambda i: (i, 0)),
        compiler_params=pltpu.CompilerParams(
            dimension_semantics=("parallel",),           # megacore sharding on v7x
            vmem_limit_bytes=int(0.75 * vmem_cap),
        ),
        cost_estimate=cost,
    )(*inputs)

    return out2d.reshape(B, S, H)


def init_params(key, hidden_size, intermediate_size):
    """Deterministic init (uniform, like PyTorch Linear defaults); weights [in,out]."""
    k1, k2, k3, k4 = jax.random.split(key, 4)
    bound1 = 1.0 / (hidden_size ** 0.5)
    bound2 = 1.0 / (intermediate_size ** 0.5)
    w1 = jax.random.uniform(k1, (hidden_size, intermediate_size),
                            jnp.float32, -bound1, bound1)
    b1 = jax.random.uniform(k2, (1, intermediate_size), jnp.float32, -bound1, bound1)
    w2 = jax.random.uniform(k3, (intermediate_size, hidden_size),
                            jnp.float32, -bound2, bound2)
    b2 = jax.random.uniform(k4, (1, hidden_size), jnp.float32, -bound2, bound2)
    gamma = jnp.ones((1, hidden_size), jnp.float32)
    beta = jnp.zeros((1, hidden_size), jnp.float32)
    return gamma, beta, w1, b1, w2, b2


if __name__ == "__main__":
    B, S, H, I = 2, 8, 32, 64   # batch=2, seq=8, hidden=32, intermediate=64

    key = jax.random.PRNGKey(0)
    kx, kp = jax.random.split(key)
    x = jax.random.normal(kx, (B, S, H), jnp.float32)
    gamma, beta, w1, b1, w2, b2 = init_params(kp, H, I)

    out = jax.block_until_ready(simple_ffn(x, gamma, beta, w1, b1, w2, b2))

    # Pure-JAX f32 reference with the module's exact semantics.
    mean = jnp.mean(x, axis=-1, keepdims=True)
    var = jnp.mean(jnp.square(x - mean), axis=-1, keepdims=True)
    xn = (x - mean) * lax.rsqrt(var + _LN_EPS) * gamma[0] + beta[0]
    h = xn @ w1 + b1[0]
    h = 0.5 * h * (1.0 + lax.erf(h * _INV_SQRT_2))
    ref = h @ w2 + b2[0] + x

    assert out.shape == (B, S, H)
    # Tolerance covers the TPU's default (bf16-pass) handling of f32 matmul operands
    # in both the kernel and the XLA reference; typical agreement is far tighter.
    assert bool(jnp.allclose(out, ref, atol=2e-2, rtol=2e-2)), \
        "mismatch vs f32 reference"
    print("KERNEL_OK")
</pallas_src>

<mosaic_0001>
module attributes {stable_mosaic.version = 11 : i64} {
  func.func @_ffn_kernel(%arg0: i32, %arg1: memref<4x128xf32, #tpu.memory_space<vmem>>, %arg2: memref<1x128xf32, #tpu.memory_space<vmem>>, %arg3: memref<1x128xf32, #tpu.memory_space<vmem>>, %arg4: memref<128x256xf32, #tpu.memory_space<vmem>>, %arg5: memref<1x256xf32, #tpu.memory_space<vmem>>, %arg6: memref<256x128xf32, #tpu.memory_space<vmem>>, %arg7: memref<1x128xf32, #tpu.memory_space<vmem>>, %arg8: memref<128x128xf32, #tpu.memory_space<vmem>>, %arg9: memref<4x128xf32, #tpu.memory_space<vmem>>) attributes {dimension_semantics = [#tpu.dimension_semantics<parallel>], iteration_bounds = array<i64: 1>, scalar_prefetch = 0 : i64, scratch_operands = 0 : i64, tpu.core_type = #tpu.core_type<tc>, window_params = [{transform_indices = @transform_0, window_bounds = array<i64: 4, 128>}, {pipeline_mode = #tpu.pipeline_mode<synchronous>, transform_indices = @transform_1, window_bounds = array<i64: 1, 128>}, {pipeline_mode = #tpu.pipeline_mode<synchronous>, transform_indices = @transform_2, window_bounds = array<i64: 1, 128>}, {pipeline_mode = #tpu.pipeline_mode<synchronous>, transform_indices = @transform_3, window_bounds = array<i64: 128, 256>}, {pipeline_mode = #tpu.pipeline_mode<synchronous>, transform_indices = @transform_4, window_bounds = array<i64: 1, 256>}, {pipeline_mode = #tpu.pipeline_mode<synchronous>, transform_indices = @transform_5, window_bounds = array<i64: 256, 128>}, {pipeline_mode = #tpu.pipeline_mode<synchronous>, transform_indices = @transform_6, window_bounds = array<i64: 1, 128>}, {pipeline_mode = #tpu.pipeline_mode<synchronous>, transform_indices = @transform_7, window_bounds = array<i64: 128, 128>}, {transform_indices = @transform_8, window_bounds = array<i64: 4, 128>}]} {
    %c0 = arith.constant 0 : index
    %c0_0 = arith.constant 0 : index
    %0 = vector.load %arg1[%c0, %c0_0] : memref<4x128xf32, #tpu.memory_space<vmem>>, vector<4x128xf32>
    %c0_1 = arith.constant 0 : index
    %c0_2 = arith.constant 0 : index
    %1 = vector.load %arg8[%c0_1, %c0_2] : memref<128x128xf32, #tpu.memory_space<vmem>>, vector<128x128xf32>
    %cst = arith.constant dense<0.000000e+00> : vector<4x128xf32>
    %2 = tpu.matmul %0, %1, %cst {dimension_numbers = #tpu.dot_dimension_numbers<[1], [0], [0], [1], [0, 0, 1, 1], [], []>} : vector<4x128xf32>, vector<128x128xf32>, vector<4x128xf32> -> vector<4x128xf32>
    %3 = arith.subf %0, %2 : vector<4x128xf32>
    %4 = arith.mulf %3, %3 : vector<4x128xf32>
    %c0_3 = arith.constant 0 : index
    %c0_4 = arith.constant 0 : index
    %5 = vector.load %arg8[%c0_3, %c0_4] : memref<128x128xf32, #tpu.memory_space<vmem>>, vector<128x128xf32>
    %cst_5 = arith.constant dense<0.000000e+00> : vector<4x128xf32>
    %6 = tpu.matmul %4, %5, %cst_5 {dimension_numbers = #tpu.dot_dimension_numbers<[1], [0], [0], [1], [0, 0, 1, 1], [], []>} : vector<4x128xf32>, vector<128x128xf32>, vector<4x128xf32> -> vector<4x128xf32>
    %cst_6 = arith.constant 9.99999996E-13 : f32
    %7 = vector.broadcast %cst_6 : f32 to vector<4x128xf32>
    %8 = arith.addf %6, %7 : vector<4x128xf32>
    %9 = math.rsqrt %8 : vector<4x128xf32>
    %10 = arith.mulf %3, %9 : vector<4x128xf32>
    %c0_7 = arith.constant 0 : index
    %c0_8 = arith.constant 0 : index
    %11 = vector.load %arg2[%c0_7, %c0_8] : memref<1x128xf32, #tpu.memory_space<vmem>>, vector<1x128xf32>
    %12 = vector.broadcast %11 : vector<1x128xf32> to vector<4x128xf32>
    %13 = arith.mulf %10, %12 : vector<4x128xf32>
    %c0_9 = arith.constant 0 : index
    %c0_10 = arith.constant 0 : index
    %14 = vector.load %arg3[%c0_9, %c0_10] : memref<1x128xf32, #tpu.memory_space<vmem>>, vector<1x128xf32>
    %15 = vector.broadcast %14 : vector<1x128xf32> to vector<4x128xf32>
    %16 = arith.addf %13, %15 : vector<4x128xf32>
    %c0_11 = arith.constant 0 : index
    %c0_12 = arith.constant 0 : index
    %17 = vector.load %arg4[%c0_11, %c0_12] : memref<128x256xf32, #tpu.memory_space<vmem>>, vector<128x256xf32>
    %cst_13 = arith.constant dense<0.000000e+00> : vector<4x256xf32>
    %18 = tpu.matmul %16, %17, %cst_13 {dimension_numbers = #tpu.dot_dimension_numbers<[1], [0], [0], [1], [0, 0, 1, 1], [], []>} : vector<4x128xf32>, vector<128x256xf32>, vector<4x256xf32> -> vector<4x256xf32>
    %c0_14 = arith.constant 0 : index
    %c0_15 = arith.constant 0 : index
    %19 = vector.load %arg5[%c0_14, %c0_15] : memref<1x256xf32, #tpu.memory_space<vmem>>, vector<1x256xf32>
    %20 = vector.broadcast %19 : vector<1x256xf32> to vector<4x256xf32>
    %21 = arith.addf %18, %20 : vector<4x256xf32>
    %cst_16 = arith.constant 5.000000e-01 : f32
    %22 = vector.broadcast %cst_16 : f32 to vector<4x256xf32>
    %23 = arith.mulf %22, %21 : vector<4x256xf32>
    %cst_17 = arith.constant 0.707106769 : f32
    %24 = vector.broadcast %cst_17 : f32 to vector<4x256xf32>
    %25 = arith.mulf %21, %24 : vector<4x256xf32>
    %26 = math.erf %25 : vector<4x256xf32>
    %cst_18 = arith.constant 1.000000e+00 : f32
    %27 = vector.broadcast %cst_18 : f32 to vector<4x256xf32>
    %28 = arith.addf %27, %26 : vector<4x256xf32>
    %29 = arith.mulf %23, %28 : vector<4x256xf32>
    %c0_19 = arith.constant 0 : index
    %c0_20 = arith.constant 0 : index
    %30 = vector.load %arg6[%c0_19, %c0_20] : memref<256x128xf32, #tpu.memory_space<vmem>>, vector<256x128xf32>
    %cst_21 = arith.constant dense<0.000000e+00> : vector<4x128xf32>
    %31 = tpu.matmul %29, %30, %cst_21 {dimension_numbers = #tpu.dot_dimension_numbers<[1], [0], [0], [1], [0, 0, 1, 1], [], []>} : vector<4x256xf32>, vector<256x128xf32>, vector<4x128xf32> -> vector<4x128xf32>
    %c0_22 = arith.constant 0 : index
    %c0_23 = arith.constant 0 : index
    %32 = vector.load %arg7[%c0_22, %c0_23] : memref<1x128xf32, #tpu.memory_space<vmem>>, vector<1x128xf32>
    %33 = vector.broadcast %32 : vector<1x128xf32> to vector<4x128xf32>
    %34 = arith.addf %31, %33 : vector<4x128xf32>
    %35 = arith.addf %34, %0 : vector<4x128xf32>
    %c0_24 = arith.constant 0 : index
    %c0_25 = arith.constant 0 : index
    %36 = vector.load %arg9[%c0_24, %c0_25] : memref<4x128xf32, #tpu.memory_space<vmem>>, vector<4x128xf32>
    tpu.vector_store %arg9[%c0_24, %c0_25], %35 {strides = array<i32>} : memref<4x128xf32, #tpu.memory_space<vmem>>, vector<4x128xf32>,
    return
  }
  func.func @transform_0(%arg0: i32) -> (i32, i32) {
    %c0_i32 = arith.constant 0 : i32
    %c0_i32_0 = arith.constant 0 : i32
    return %arg0, %c0_i32 : i32, i32
  }
  func.func @transform_1(%arg0: i32) -> (i32, i32) {
    %c0_i32 = arith.constant 0 : i32
    %c0_i32_0 = arith.constant 0 : i32
    %c0_i32_1 = arith.constant 0 : i32
    return %c0_i32, %c0_i32_0 : i32, i32
  }
  func.func @transform_2(%arg0: i32) -> (i32, i32) {
    %c0_i32 = arith.constant 0 : i32
    %c0_i32_0 = arith.constant 0 : i32
    %c0_i32_1 = arith.constant 0 : i32
    return %c0_i32, %c0_i32_0 : i32, i32
  }
  func.func @transform_3(%arg0: i32) -> (i32, i32) {
    %c0_i32 = arith.constant 0 : i32
    %c0_i32_0 = arith.constant 0 : i32
    %c0_i32_1 = arith.constant 0 : i32
    return %c0_i32, %c0_i32_0 : i32, i32
  }
  func.func @transform_4(%arg0: i32) -> (i32, i32) {
    %c0_i32 = arith.constant 0 : i32
    %c0_i32_0 = arith.constant 0 : i32
    %c0_i32_1 = arith.constant 0 : i32
    return %c0_i32, %c0_i32_0 : i32, i32
  }
  func.func @transform_5(%arg0: i32) -> (i32, i32) {
    %c0_i32 = arith.constant 0 : i32
    %c0_i32_0 = arith.constant 0 : i32
    %c0_i32_1 = arith.constant 0 : i32
    return %c0_i32, %c0_i32_0 : i32, i32
  }
  func.func @transform_6(%arg0: i32) -> (i32, i32) {
    %c0_i32 = arith.constant 0 : i32
    %c0_i32_0 = arith.constant 0 : i32
    %c0_i32_1 = arith.constant 0 : i32
    return %c0_i32, %c0_i32_0 : i32, i32
  }
  func.func @transform_7(%arg0: i32) -> (i32, i32) {
    %c0_i32 = arith.constant 0 : i32
    %c0_i32_0 = arith.constant 0 : i32
    %c0_i32_1 = arith.constant 0 : i32
    return %c0_i32, %c0_i32_0 : i32, i32
  }
  func.func @transform_8(%arg0: i32) -> (i32, i32) {
    %c0_i32 = arith.constant 0 : i32
    %c0_i32_0 = arith.constant 0 : i32
    return %arg0, %c0_i32 : i32, i32
  }
}

</mosaic_0001>

<llo_original>
// kernel: tpu_custom_call.1
$region0: #{tpu_custom_call.1}
  #allocation0 [shape = 'u32[]', space=smem, size = 0x4, offset = 0x4, fixed_abs, tag = 'smem constant byte address 0x4 - core index']
  #allocation1 [shape = 'u32[144,128]{1,0:T(1,128)}', space=vmem, size = 0x12000, scoped, tag = 'internal scratch']
  %s0 = inlined_call_operand.hbm [shape: f32[4,128], index: 0, kind: input, shape index: {}]
  %s1 = inlined_call_operand.vmem [shape: f32[1,128], index: 1, kind: input, shape index: {}]
  %s2 = inlined_call_operand.vmem [shape: f32[1,128], index: 2, kind: input, shape index: {}]
  %s3 = inlined_call_operand.hbm [shape: f32[128,256], index: 3, kind: input, shape index: {}]
  %s4 = inlined_call_operand.vmem [shape: f32[1,256], index: 4, kind: input, shape index: {}]
  %s5 = inlined_call_operand.hbm [shape: f32[256,128], index: 5, kind: input, shape index: {}]
  %s6 = inlined_call_operand.vmem [shape: f32[1,128], index: 6, kind: input, shape index: {}]
  %s7 = inlined_call_operand.hbm [shape: f32[128,128], index: 7, kind: input, shape index: {}]
  %s8 = inlined_call_operand.hbm [shape: f32[4,128], index: 8, kind: output, shape index: {}]
  %s9 = sld [smem:[#allocation0]]
  $region58: #{tpu_custom_call.1} parent=0
    _
  %s11 = ssub.s32 1, %s9
  %s12 = scalar_select 0, %s11, %s9
  $region1: #{tpu_custom_call.1} parent=0
    #allocation2 [shape = 'u8[2048]{0}', space=vmem, size = 0x800, scoped, tag = 'input window, operand 0, single buffered']
    #allocation3 [shape = 's32[1]{0}', space=sflag, size = 0x4, scoped, tag = 'scoped memory for tpu_custom_call.1']
    #allocation4 [shape = 's32[1]{0}', space=sflag, size = 0x4, scoped, tag = 'scoped memory for tpu_custom_call.1']
    #allocation5 [shape = 'u8[131072]{0}', space=vmem, size = 0x20000, scoped, tag = 'input window, operand 3, single buffered']
    #allocation6 [shape = 's32[1]{0}', space=sflag, size = 0x4, scoped, tag = 'scoped memory for tpu_custom_call.1']
    #allocation7 [shape = 'u8[131072]{0}', space=vmem, size = 0x20000, scoped, tag = 'input window, operand 5, single buffered']
    #allocation8 [shape = 'u8[65536]{0}', space=vmem, size = 0x10000, scoped, tag = 'input window, operand 7, single buffered']
    #allocation9 [shape = 's32[1]{0}', space=sflag, size = 0x4, scoped, tag = 'scoped memory for tpu_custom_call.1']
    #allocation10 [shape = 'u8[2048]{0}', space=vmem, size = 0x800, scoped, tag = 'output window, operand 0, single buffered']
    %13 = vsyncpa [#allocation3], 0
    %14 = vsyncpa [#allocation6], 0
    %15 = vsyncpa [#allocation9], 0
    %16 = vsyncpa [#allocation4], 0
    // Predicated region
    $region2: #{tpu_custom_call.1} parent=1 // pred_check
      _
    $region3: #{tpu_custom_call.1} parent=1 // pred_check_branch
      %18 = sbr.rel (0) target = $region5
    $region4: #{tpu_custom_call.1} parent=1 // pred_region
      %s20 = ssub.s32 64, 64
      %21 = vsyncadd [#allocation3], %s20
      %s23 = sshll.u32 [#allocation2], 4
      %s24 = int_to_ptr.vmem [resolvable:$true] %s23
      %26 = dma.hbm_to_vmem [thread:$0]  %s0, 64, %s24, [#allocation3]
    $region5: #{tpu_custom_call.1} parent=1 // pred_fallthru
      _
    // Predicated region
    $region6: #{tpu_custom_call.1} parent=1 // pred_check
      _
    $region7: #{tpu_custom_call.1} parent=1 // pred_check_branch
      %28 = sbr.rel (0) target = $region9
    $region8: #{tpu_custom_call.1} parent=1 // pred_region
      _
    $region9: #{tpu_custom_call.1} parent=1 // pred_fallthru
      _
    // Predicated region
    $region10: #{tpu_custom_call.1} parent=1 // pred_check
      _
    $region11: #{tpu_custom_call.1} parent=1 // pred_check_branch
      %30 = sbr.rel (0) target = $region13
    $region12: #{tpu_custom_call.1} parent=1 // pred_region
      _
    $region13: #{tpu_custom_call.1} parent=1 // pred_fallthru
      _
    // Predicated region
    $region14: #{tpu_custom_call.1} parent=1 // pred_check
      _
    $region15: #{tpu_custom_call.1} parent=1 // pred_check_branch
      %32 = sbr.rel (0) target = $region17
    $region16: #{tpu_custom_call.1} parent=1 // pred_region
      %s34 = ssub.s32 4096, 4096
      %35 = vsyncadd [#allocation6], %s34
      %s36 = sshll.u32 [#allocation5], 4
      %s37 = int_to_ptr.vmem [resolvable:$true] %s36
      %42 = dma.hbm_to_vmem [thread:$0]  %s3, 4096, %s37, [#allocation6], 256, 256, 16
    $region17: #{tpu_custom_call.1} parent=1 // pred_fallthru
      _
    // Predicated region
    $region18: #{tpu_custom_call.1} parent=1 // pred_check
      _
    $region19: #{tpu_custom_call.1} parent=1 // pred_check_branch
      %44 = sbr.rel (0) target = $region21
    $region20: #{tpu_custom_call.1} parent=1 // pred_region
      _
    $region21: #{tpu_custom_call.1} parent=1 // pred_fallthru
      _
    // Predicated region
    $region22: #{tpu_custom_call.1} parent=1 // pred_check
      _
    $region23: #{tpu_custom_call.1} parent=1 // pred_check_branch
      %46 = sbr.rel (0) target = $region25
    $region24: #{tpu_custom_call.1} parent=1 // pred_region
      %s48 = ssub.s32 4096, 4096
      %49 = vsyncadd [#allocation6], %s48
      %s50 = sshll.u32 [#allocation7], 4
      %s51 = int_to_ptr.vmem [resolvable:$true] %s50
      %56 = dma.hbm_to_vmem [thread:$0]  %s5, 4096, %s51, [#allocation6], 128, 128, 8
    $region25: #{tpu_custom_call.1} parent=1 // pred_fallthru
      _
    // Predicated region
    $region26: #{tpu_custom_call.1} parent=1 // pred_check
      _
    $region27: #{tpu_custom_call.1} parent=1 // pred_check_branch
      %58 = sbr.rel (0) target = $region29
    $region28: #{tpu_custom_call.1} parent=1 // pred_region
      _
    $region29: #{tpu_custom_call.1} parent=1 // pred_fallthru
      _
    // Predicated region
    $region30: #{tpu_custom_call.1} parent=1 // pred_check
      _
    $region31: #{tpu_custom_call.1} parent=1 // pred_check_branch
      %60 = sbr.rel (0) target = $region33
    $region32: #{tpu_custom_call.1} parent=1 // pred_region
      %s62 = ssub.s32 2048, 2048
      %63 = vsyncadd [#allocation9], %s62
      %s64 = sshll.u32 [#allocation8], 4
      %s65 = int_to_ptr.vmem [resolvable:$true] %s64
      %70 = dma.hbm_to_vmem [thread:$0]  %s7, 2048, %s65, [#allocation9], 128, 128, 8
    $region33: #{tpu_custom_call.1} parent=1 // pred_fallthru
      _
    // Predicated region
    $region34: #{tpu_custom_call.1} parent=1 // pred_check
      _
    $region35: #{tpu_custom_call.1} parent=1 // pred_check_branch
      %72 = sbr.rel (0) target = $region37
    $region36: #{tpu_custom_call.1} parent=1 // pred_region
      %73 = dma.done [#allocation3], 64
    $region37: #{tpu_custom_call.1} parent=1 // pred_fallthru
      _
    // Predicated region
    $region38: #{tpu_custom_call.1} parent=1 // pred_check
      _
    $region39: #{tpu_custom_call.1} parent=1 // pred_check_branch
      %75 = sbr.rel (0) target = $region41
    $region40: #{tpu_custom_call.1} parent=1 // pred_region
      %76 = dma.done [#allocation6], 4096
    $region41: #{tpu_custom_call.1} parent=1 // pred_fallthru
      _
    // Predicated region
    $region42: #{tpu_custom_call.1} parent=1 // pred_check
      _
    $region43: #{tpu_custom_call.1} parent=1 // pred_check_branch
      %78 = sbr.rel (0) target = $region45
    $region44: #{tpu_custom_call.1} parent=1 // pred_region
      %79 = dma.done [#allocation6], 4096
    $region45: #{tpu_custom_call.1} parent=1 // pred_fallthru
      _
    // Predicated region
    $region46: #{tpu_custom_call.1} parent=1 // pred_check
      _
    $region47: #{tpu_custom_call.1} parent=1 // pred_check_branch
      %81 = sbr.rel (0) target = $region49
    $region48: #{tpu_custom_call.1} parent=1 // pred_region
      %82 = dma.done [#allocation9], 2048
    $region49: #{tpu_custom_call.1} parent=1 // pred_fallthru
      _
    %v83 = vld [vmem:[#allocation2] sm:$0xf]
    %v84 = vld [vmem:[#allocation8] sm:$0xff]
    %v85 = vld [vmem:[#allocation8 + $0x8] sm:$0xff]
    %v86 = vld [vmem:[#allocation8 + $0x10] sm:$0xff]
    %v87 = vld [vmem:[#allocation8 + $0x18] sm:$0xff]
    %v88 = vld [vmem:[#allocation8 + $0x20] sm:$0xff]
    %v89 = vld [vmem:[#allocation8 + $0x28] sm:$0xff]
    %v90 = vld [vmem:[#allocation8 + $0x30] sm:$0xff]
    %v91 = vld [vmem:[#allocation8 + $0x38] sm:$0xff]
    %v92 = vld [vmem:[#allocation8 + $0x40] sm:$0xff]
    %v93 = vld [vmem:[#allocation8 + $0x48] sm:$0xff]
    %v94 = vld [vmem:[#allocation8 + $0x50] sm:$0xff]
    %v95 = vld [vmem:[#allocation8 + $0x58] sm:$0xff]
    %v96 = vld [vmem:[#allocation8 + $0x60] sm:$0xff]
    %v97 = vld [vmem:[#allocation8 + $0x68] sm:$0xff]
    %v98 = vld [vmem:[#allocation8 + $0x70] sm:$0xff]
    %v99 = vld [vmem:[#allocation8 + $0x78] sm:$0xff]
    %100 = vmatprep.subr.mxu0 0.0
    %101 = vmatpush1.msra.mxu0 %v84
    %102 = vmatprep.subr.mxu0 0.0
    %103 = vmatpush1.msra.mxu0 %v85
    %104 = vmatprep.subr.mxu0 0.0
    %105 = vmatpush1.msra.mxu0 %v86
    %106 = vmatprep.subr.mxu0 0.0
    %107 = vmatpush1.msra.mxu0 %v87
    %108 = vmatprep.subr.mxu0 0.0
    %109 = vmatpush1.msra.mxu0 %v88
    %110 = vmatprep.subr.mxu0 0.0
    %111 = vmatpush1.msra.mxu0 %v89
    %112 = vmatprep.subr.mxu0 0.0
    %113 = vmatpush1.msra.mxu0 %v90
    %114 = vmatprep.subr.mxu0 0.0
    %115 = vmatpush1.msra.mxu0 %v91
    %116 = vmatprep.subr.mxu0 0.0
    %117 = vmatpush1.msra.mxu0 %v92
    %118 = vmatprep.subr.mxu0 0.0
    %119 = vmatpush1.msra.mxu0 %v93
    %120 = vmatprep.subr.mxu0 0.0
    %121 = vmatpush1.msra.mxu0 %v94
    %122 = vmatprep.subr.mxu0 0.0
    %123 = vmatpush1.msra.mxu0 %v95
    %124 = vmatprep.subr.mxu0 0.0
    %125 = vmatpush1.msra.mxu0 %v96
    %126 = vmatprep.subr.mxu0 0.0
    %127 = vmatpush1.msra.mxu0 %v97
    %128 = vmatprep.subr.mxu0 0.0
    %129 = vmatpush1.msra.mxu0 %v98
    %130 = vmatprep.subr.mxu0 0.0
    %131 = vmatpush1.msra.mxu0 %v99
    %132 = vmatprep.subr.mxu0 0.0
    %133 = vmatpush1.msra.mxu0 0.0
    %134 = vmatprep.subr.mxu0 0.0
    %135 = vmatpush1.msra.mxu0 0.0
    %136 = vmatprep.subr.mxu0 0.0
    %137 = vmatpush1.msra.mxu0 0.0
    %138 = vmatprep.subr.mxu0 0.0
    %139 = vmatpush1.msra.mxu0 0.0
    %140 = vmatprep.subr.mxu0 0.0
    %141 = vmatpush1.msra.mxu0 0.0
    %142 = vmatprep.subr.mxu0 0.0
    %143 = vmatpush1.msra.mxu0 0.0
    %144 = vmatprep.subr.mxu0 0.0
    %145 = vmatpush1.msra.mxu0 0.0
    %146 = vmatprep.subr.mxu0 0.0
    %147 = vmatpush1.msra.mxu0 0.0
    %148 = vmatprep.subr.mxu0 0.0
    %149 = vmatpush1.msra.mxu0 0.0
    %150 = vmatprep.subr.mxu0 0.0
    %151 = vmatpush1.msra.mxu0 0.0
    %152 = vmatprep.subr.mxu0 0.0
    %153 = vmatpush1.msra.mxu0 0.0
    %154 = vmatprep.subr.mxu0 0.0
    %155 = vmatpush1.msra.mxu0 0.0
    %156 = vmatprep.subr.mxu0 0.0
    %157 = vmatpush1.msra.mxu0 0.0
    %158 = vmatprep.subr.mxu0 0.0
    %159 = vmatpush1.msra.mxu0 0.0
    %160 = vmatprep.subr.mxu0 0.0
    %161 = vmatpush1.msra.mxu0 0.0
    %162 = vmatprep.subr.mxu0 0.0
    %163 = vmatpush1.msra.mxu0 0.0
    %164 = vmatprep.mubr.f32.mxu0 0.0
    %165 = vmatmul.mubr.f32.gmra.mrb[0].mxu0 %v83
    %v166 = vpop.f32.mrb[0].mxu0
    %v167 = vadd.f32 0.0, %v166
    %v168 = vpop.f32.mrb[0].mxu0
    %169 = vdwg.mxu0
    %v170 = vsub.f32 %v83, %v167
    %v171 = vmul.f32 %v170, %v170
    %172 = vmatprep.subr.mxu0 0.0
    %173 = vmatpush1.msra.mxu0 %v84
    %174 = vmatprep.subr.mxu0 0.0
    %175 = vmatpush1.msra.mxu0 %v85
    %176 = vmatprep.subr.mxu0 0.0
    %177 = vmatpush1.msra.mxu0 %v86
    %178 = vmatprep.subr.mxu0 0.0
    %179 = vmatpush1.msra.mxu0 %v87
    %180 = vmatprep.subr.mxu0 0.0
    %181 = vmatpush1.msra.mxu0 %v88
    %182 = vmatprep.subr.mxu0 0.0
    %183 = vmatpush1.msra.mxu0 %v89
    %184 = vmatprep.subr.mxu0 0.0
    %185 = vmatpush1.msra.mxu0 %v90
    %186 = vmatprep.subr.mxu0 0.0
    %187 = vmatpush1.msra.mxu0 %v91
    %188 = vmatprep.subr.mxu0 0.0
    %189 = vmatpush1.msra.mxu0 %v92
    %190 = vmatprep.subr.mxu0 0.0
    %191 = vmatpush1.msra.mxu0 %v93
    %192 = vmatprep.subr.mxu0 0.0
    %193 = vmatpush1.msra.mxu0 %v94
    %194 = vmatprep.subr.mxu0 0.0
    %195 = vmatpush1.msra.mxu0 %v95
    %196 = vmatprep.subr.mxu0 0.0
    %197 = vmatpush1.msra.mxu0 %v96
    %198 = vmatprep.subr.mxu0 0.0
    %199 = vmatpush1.msra.mxu0 %v97
    %200 = vmatprep.subr.mxu0 0.0
    %201 = vmatpush1.msra.mxu0 %v98
    %202 = vmatprep.subr.mxu0 0.0
    %203 = vmatpush1.msra.mxu0 %v99
    %204 = vmatprep.subr.mxu0 0.0
    %205 = vmatpush1.msra.mxu0 0.0
    %206 = vmatprep.subr.mxu0 0.0
    %207 = vmatpush1.msra.mxu0 0.0
    %208 = vmatprep.subr.mxu0 0.0
    %209 = vmatpush1.msra.mxu0 0.0
    %210 = vmatprep.subr.mxu0 0.0
    %211 = vmatpush1.msra.mxu0 0.0
    %212 = vmatprep.subr.mxu0 0.0
    %213 = vmatpush1.msra.mxu0 0.0
    %214 = vmatprep.subr.mxu0 0.0
    %215 = vmatpush1.msra.mxu0 0.0
    %216 = vmatprep.subr.mxu0 0.0
    %217 = vmatpush1.msra.mxu0 0.0
    %218 = vmatprep.subr.mxu0 0.0
    %219 = vmatpush1.msra.mxu0 0.0
    %220 = vmatprep.subr.mxu0 0.0
    %221 = vmatpush1.msra.mxu0 0.0
    %222 = vmatprep.subr.mxu0 0.0
    %223 = vmatpush1.msra.mxu0 0.0
    %224 = vmatprep.subr.mxu0 0.0
    %225 = vmatpush1.msra.mxu0 0.0
    %226 = vmatprep.subr.mxu0 0.0
    %227 = vmatpush1.msra.mxu0 0.0
    %228 = vmatprep.subr.mxu0 0.0
    %229 = vmatpush1.msra.mxu0 0.0
    %230 = vmatprep.subr.mxu0 0.0
    %231 = vmatpush1.msra.mxu0 0.0
    %232 = vmatprep.subr.mxu0 0.0
    %233 = vmatpush1.msra.mxu0 0.0
    %234 = vmatprep.subr.mxu0 0.0
    %235 = vmatpush1.msra.mxu0 0.0
    %236 = vmatprep.mubr.f32.mxu0 0.0
    %237 = vmatmul.mubr.f32.gmra.mrb[0].mxu0 %v171
    %v238 = vpop.f32.mrb[0].mxu0
    %v239 = vadd.f32 1e-12, %v238
    %v240 = vpop.f32.mrb[0].mxu0
    %241 = vdwg.mxu0
    %v242 = vrsqrt.pop %v239
    %v243 = vmul.f32 %v170, %v242
    %v244 = vld [vmem:[%s1] sm:$0x1]
    %v246 = vlaneseq
    %v247 = vshrl.u32 %v246, 7
    %v248 = vsub.s32 0, %v247
    %v249 = vrot.slane %v244, %v248
    %v251 = vmul.f32 %v243, %v249
    %v252 = vld [vmem:[%s2] sm:$0x1]
    %v254 = vlaneseq
    %v255 = vshrl.u32 %v254, 7
    %v256 = vsub.s32 0, %v255
    %v257 = vrot.slane %v252, %v256
    %v259 = vadd.f32 %v251, %v257
    %v260 = vld [vmem:[#allocation5] sm:$0xff]
    %v261 = vld [vmem:[#allocation5 + $0x8] sm:$0xff]
    %v262 = vld [vmem:[#allocation5 + $0x10] sm:$0xff]
    %v263 = vld [vmem:[#allocation5 + $0x18] sm:$0xff]
    %v264 = vld [vmem:[#allocation5 + $0x20] sm:$0xff]
    %v265 = vld [vmem:[#allocation5 + $0x28] sm:$0xff]
    %v266 = vld [vmem:[#allocation5 + $0x30] sm:$0xff]
    %v267 = vld [vmem:[#allocation5 + $0x38] sm:$0xff]
    %v268 = vld [vmem:[#allocation5 + $0x40] sm:$0xff]
    %v269 = vld [vmem:[#allocation5 + $0x48] sm:$0xff]
    %v270 = vld [vmem:[#allocation5 + $0x50] sm:$0xff]
    %v271 = vld [vmem:[#allocation5 + $0x58] sm:$0xff]
    %v272 = vld [vmem:[#allocation5 + $0x60] sm:$0xff]
    %v273 = vld [vmem:[#allocation5 + $0x68] sm:$0xff]
    %v274 = vld [vmem:[#allocation5 + $0x70] sm:$0xff]
    %v275 = vld [vmem:[#allocation5 + $0x78] sm:$0xff]
    %v276 = vld [vmem:[#allocation5 + $0x80] sm:$0xff]
    %v277 = vld [vmem:[#allocation5 + $0x88] sm:$0xff]
    %v278 = vld [vmem:[#allocation5 + $0x90] sm:$0xff]
    %v279 = vld [vmem:[#allocation5 + $0x98] sm:$0xff]
    %v280 = vld [vmem:[#allocation5 + $0xa0] sm:$0xff]
    %v281 = vld [vmem:[#allocation5 + $0xa8] sm:$0xff]
    %v282 = vld [vmem:[#allocation5 + $0xb0] sm:$0xff]
    %v283 = vld [vmem:[#allocation5 + $0xb8] sm:$0xff]
    %v284 = vld [vmem:[#allocation5 + $0xc0] sm:$0xff]
    %v285 = vld [vmem:[#allocation5 + $0xc8] sm:$0xff]
    %v286 = vld [vmem:[#allocation5 + $0xd0] sm:$0xff]
    %v287 = vld [vmem:[#allocation5 + $0xd8] sm:$0xff]
    %v288 = vld [vmem:[#allocation5 + $0xe0] sm:$0xff]
    %v289 = vld [vmem:[#allocation5 + $0xe8] sm:$0xff]
    %v290 = vld [vmem:[#allocation5 + $0xf0] sm:$0xff]
    %v291 = vld [vmem:[#allocation5 + $0xf8] sm:$0xff]
    %v292 = vld [vmem:[%s4] sm:$0x3]
    %v294 = vlaneseq
    %v295 = vshrl.u32 %v294, 7
    %v296 = vsub.s32 0, %v295
    %v297 = vrot.slane %v292, %v296
    %v298 = vlaneseq
    %v299 = vshrl.u32 %v298, 7
    %v300 = vsub.s32 1, %v299
    %v301 = vrot.slane %v292, %v300
    %304 = vmatprep.subr.mxu0 %v261
    %305 = vmatpush1.msra.mxu0 %v260
    %306 = vmatprep.subr.mxu0 %v263
    %307 = vmatpush1.msra.mxu0 %v262
    %308 = vmatprep.subr.mxu0 %v265
    %309 = vmatpush1.msra.mxu0 %v264
    %310 = vmatprep.subr.mxu0 %v267
    %311 = vmatpush1.msra.mxu0 %v266
    %312 = vmatprep.subr.mxu0 %v269
    %313 = vmatpush1.msra.mxu0 %v268
    %314 = vmatprep.subr.mxu0 %v271
    %315 = vmatpush1.msra.mxu0 %v270
    %316 = vmatprep.subr.mxu0 %v273
    %317 = vmatpush1.msra.mxu0 %v272
    %318 = vmatprep.subr.mxu0 %v275
    %319 = vmatpush1.msra.mxu0 %v274
    %320 = vmatprep.subr.mxu0 %v277
    %321 = vmatpush1.msra.mxu0 %v276
    %322 = vmatprep.subr.mxu0 %v279
    %323 = vmatpush1.msra.mxu0 %v278
    %324 = vmatprep.subr.mxu0 %v281
    %325 = vmatpush1.msra.mxu0 %v280
    %326 = vmatprep.subr.mxu0 %v283
    %327 = vmatpush1.msra.mxu0 %v282
    %328 = vmatprep.subr.mxu0 %v285
    %329 = vmatpush1.msra.mxu0 %v284
    %330 = vmatprep.subr.mxu0 %v287
    %331 = vmatpush1.msra.mxu0 %v286
    %332 = vmatprep.subr.mxu0 %v289
    %333 = vmatpush1.msra.mxu0 %v288
    %334 = vmatprep.subr.mxu0 %v291
    %335 = vmatpush1.msra.mxu0 %v290
    %336 = vmatprep.subr.mxu0 0.0
    %337 = vmatpush1.msra.mxu0 0.0
    %338 = vmatprep.subr.mxu0 0.0
    %339 = vmatpush1.msra.mxu0 0.0
    %340 = vmatprep.subr.mxu0 0.0
    %341 = vmatpush1.msra.mxu0 0.0
    %342 = vmatprep.subr.mxu0 0.0
    %343 = vmatpush1.msra.mxu0 0.0
    %344 = vmatprep.subr.mxu0 0.0
    %345 = vmatpush1.msra.mxu0 0.0
    %346 = vmatprep.subr.mxu0 0.0
    %347 = vmatpush1.msra.mxu0 0.0
    %348 = vmatprep.subr.mxu0 0.0
    %349 = vmatpush1.msra.mxu0 0.0
    %350 = vmatprep.subr.mxu0 0.0
    %351 = vmatpush1.msra.mxu0 0.0
    %352 = vmatprep.subr.mxu0 0.0
    %353 = vmatpush1.msra.mxu0 0.0
    %354 = vmatprep.subr.mxu0 0.0
    %355 = vmatpush1.msra.mxu0 0.0
    %356 = vmatprep.subr.mxu0 0.0
    %357 = vmatpush1.msra.mxu0 0.0
    %358 = vmatprep.subr.mxu0 0.0
    %359 = vmatpush1.msra.mxu0 0.0
    %360 = vmatprep.subr.mxu0 0.0
    %361 = vmatpush1.msra.mxu0 0.0
    %362 = vmatprep.subr.mxu0 0.0
    %363 = vmatpush1.msra.mxu0 0.0
    %364 = vmatprep.subr.mxu0 0.0
    %365 = vmatpush1.msra.mxu0 0.0
    %366 = vmatprep.subr.mxu0 0.0
    %367 = vmatpush1.msra.mxu0 0.0
    %368 = vmatprep.mubr.f32.mxu0 0.0
    %369 = vmatmul.mubr.f32.gmra.mrb[0].mxu0 %v259
    %v370 = vpop.f32.mrb[0].mxu0
    %v371 = vadd.f32 %v297, %v370
    %v372 = vpop.f32.mrb[0].mxu0
    %v373 = vadd.f32 %v301, %v372
    %374 = vdwg.mxu0
    %v375 = vmul.f32 %v371, 0.5
    %v376 = vmul.f32 %v373, 0.5
    %v377 = vmul.f32 %v371, 0.70710677
    %v378 = vmul.f32 %v373, 0.70710677
    %v379 = verf.f32.pop %v377
    %v380 = verf.f32.pop %v378
    %v381 = vadd.f32 %v379, 1.0
    %v382 = vadd.f32 %v380, 1.0
    %v383 = vmul.f32 %v375, %v381
    %v384 = vmul.f32 %v376, %v382
    %v385 = vld [vmem:[#allocation7] sm:$0xff]
    %v386 = vld [vmem:[#allocation7 + $0x8] sm:$0xff]
    %v387 = vld [vmem:[#allocation7 + $0x10] sm:$0xff]
    %v388 = vld [vmem:[#allocation7 + $0x18] sm:$0xff]
    %v389 = vld [vmem:[#allocation7 + $0x20] sm:$0xff]
    %v390 = vld [vmem:[#allocation7 + $0x28] sm:$0xff]
    %v391 = vld [vmem:[#allocation7 + $0x30] sm:$0xff]
    %v392 = vld [vmem:[#allocation7 + $0x38] sm:$0xff]
    %v393 = vld [vmem:[#allocation7 + $0x40] sm:$0xff]
    %v394 = vld [vmem:[#allocation7 + $0x48] sm:$0xff]
    %v395 = vld [vmem:[#allocation7 + $0x50] sm:$0xff]
    %v396 = vld [vmem:[#allocation7 + $0x58] sm:$0xff]
    %v397 = vld [vmem:[#allocation7 + $0x60] sm:$0xff]
    %v398 = vld [vmem:[#allocation7 + $0x68] sm:$0xff]
    %v399 = vld [vmem:[#allocation7 + $0x70] sm:$0xff]
    %v400 = vld [vmem:[#allocation7 + $0x78] sm:$0xff]
    %v401 = vld [vmem:[#allocation7 + $0x80] sm:$0xff]
    %v402 = vld [vmem:[#allocation7 + $0x88] sm:$0xff]
    %v403 = vld [vmem:[#allocation7 + $0x90] sm:$0xff]
    %v404 = vld [vmem:[#allocation7 + $0x98] sm:$0xff]
    %v405 = vld [vmem:[#allocation7 + $0xa0] sm:$0xff]
    %v406 = vld [vmem:[#allocation7 + $0xa8] sm:$0xff]
    %v407 = vld [vmem:[#allocation7 + $0xb0] sm:$0xff]
    %v408 = vld [vmem:[#allocation7 + $0xb8] sm:$0xff]
    %v409 = vld [vmem:[#allocation7 + $0xc0] sm:$0xff]
    %v410 = vld [vmem:[#allocation7 + $0xc8] sm:$0xff]
    %v411 = vld [vmem:[#allocation7 + $0xd0] sm:$0xff]
    %v412 = vld [vmem:[#allocation7 + $0xd8] sm:$0xff]
    %v413 = vld [vmem:[#allocation7 + $0xe0] sm:$0xff]
    %v414 = vld [vmem:[#allocation7 + $0xe8] sm:$0xff]
    %v415 = vld [vmem:[#allocation7 + $0xf0] sm:$0xff]
    %v416 = vld [vmem:[#allocation7 + $0xf8] sm:$0xff]
    %v417 = vld [vmem:[%s6] sm:$0x1]
    %v419 = vlaneseq
    %v420 = vshrl.u32 %v419, 7
    %v421 = vsub.s32 0, %v420
    %v422 = vrot.slane %v417, %v421
    %424 = vmatprep.subr.mxu0 0.0
    %425 = vmatpush1.msra.mxu0 %v385
    %426 = vmatprep.subr.mxu0 0.0
    %427 = vmatpush1.msra.mxu0 %v386
    %428 = vmatprep.subr.mxu0 0.0
    %429 = vmatpush1.msra.mxu0 %v387
    %430 = vmatprep.subr.mxu0 0.0
    %431 = vmatpush1.msra.mxu0 %v388
    %432 = vmatprep.subr.mxu0 0.0
    %433 = vmatpush1.msra.mxu0 %v389
    %434 = vmatprep.subr.mxu0 0.0
    %435 = vmatpush1.msra.mxu0 %v390
    %436 = vmatprep.subr.mxu0 0.0
    %437 = vmatpush1.msra.mxu0 %v391
    %438 = vmatprep.subr.mxu0 0.0
    %439 = vmatpush1.msra.mxu0 %v392
    %440 = vmatprep.subr.mxu0 0.0
    %441 = vmatpush1.msra.mxu0 %v393
    %442 = vmatprep.subr.mxu0 0.0
    %443 = vmatpush1.msra.mxu0 %v394
    %444 = vmatprep.subr.mxu0 0.0
    %445 = vmatpush1.msra.mxu0 %v395
    %446 = vmatprep.subr.mxu0 0.0
    %447 = vmatpush1.msra.mxu0 %v396
    %448 = vmatprep.subr.mxu0 0.0
    %449 = vmatpush1.msra.mxu0 %v397
    %450 = vmatprep.subr.mxu0 0.0
    %451 = vmatpush1.msra.mxu0 %v398
    %452 = vmatprep.subr.mxu0 0.0
    %453 = vmatpush1.msra.mxu0 %v399
    %454 = vmatprep.subr.mxu0 0.0
    %455 = vmatpush1.msra.mxu0 %v400
    %456 = vmatprep.subr.mxu0 0.0
    %457 = vmatpush1.msra.mxu0 %v401
    %458 = vmatprep.subr.mxu0 0.0
    %459 = vmatpush1.msra.mxu0 %v402
    %460 = vmatprep.subr.mxu0 0.0
    %461 = vmatpush1.msra.mxu0 %v403
    %462 = vmatprep.subr.mxu0 0.0
    %463 = vmatpush1.msra.mxu0 %v404
    %464 = vmatprep.subr.mxu0 0.0
    %465 = vmatpush1.msra.mxu0 %v405
    %466 = vmatprep.subr.mxu0 0.0
    %467 = vmatpush1.msra.mxu0 %v406
    %468 = vmatprep.subr.mxu0 0.0
    %469 = vmatpush1.msra.mxu0 %v407
    %470 = vmatprep.subr.mxu0 0.0
    %471 = vmatpush1.msra.mxu0 %v408
    %472 = vmatprep.subr.mxu0 0.0
    %473 = vmatpush1.msra.mxu0 %v409
    %474 = vmatprep.subr.mxu0 0.0
    %475 = vmatpush1.msra.mxu0 %v410
    %476 = vmatprep.subr.mxu0 0.0
    %477 = vmatpush1.msra.mxu0 %v411
    %478 = vmatprep.subr.mxu0 0.0
    %479 = vmatpush1.msra.mxu0 %v412
    %480 = vmatprep.subr.mxu0 0.0
    %481 = vmatpush1.msra.mxu0 %v413
    %482 = vmatprep.subr.mxu0 0.0
    %483 = vmatpush1.msra.mxu0 %v414
    %484 = vmatprep.subr.mxu0 0.0
    %485 = vmatpush1.msra.mxu0 %v415
    %486 = vmatprep.subr.mxu0 0.0
    %487 = vmatpush1.msra.mxu0 %v416
    %488 = vmatprep.mubr.f32.mxu0 %v384
    %489 = vmatmul.mubr.f32.gmra.mrb[0].mxu0 %v383
    %v490 = vpop.f32.mrb[0].mxu0
    %v491 = vadd.f32 %v422, %v490
    %v492 = vpop.f32.mrb[0].mxu0
    %493 = vdwg.mxu0
    %v494 = vadd.f32 %v491, %v83
    %495 = vst [vmem:[#allocation10] sm:$0xf] %v494
    // Predicated region
    $region50: #{tpu_custom_call.1} parent=1 // pred_check
      _
    $region51: #{tpu_custom_call.1} parent=1 // pred_check_branch
      %497 = sbr.rel (0) target = $region53
    $region52: #{tpu_custom_call.1} parent=1 // pred_region
      %s499 = ssub.s32 64, 64
      %500 = vsyncadd [#allocation4], %s499
      %s502 = sshll.u32 [#allocation10], 4
      %s503 = int_to_ptr.vmem [resolvable:$true] %s502
      %505 = dma.vmem_to_hbm [thread:$0]  %s503, 64, %s8, [#allocation4]
    $region53: #{tpu_custom_call.1} parent=1 // pred_fallthru
      _
    // Predicated region
    $region54: #{tpu_custom_call.1} parent=1 // pred_check
      _
    $region55: #{tpu_custom_call.1} parent=1 // pred_check_branch
      %507 = sbr.rel (0) target = $region57
    $region56: #{tpu_custom_call.1} parent=1 // pred_region
      %508 = dma.done [#allocation4], 64
    $region57: #{tpu_custom_call.1} parent=1 // pred_fallthru
      _
    %509 = vsyncpa [#allocation3], 1
    %510 = vsyncpa [#allocation6], 1
    %511 = vsyncpa [#allocation9], 1
    %512 = vsyncpa [#allocation4], 1

</llo_original>
